<compile_context>
chip_gen: v6e
topology: v6e:2x2x1
jax: 0.10.0
libtpu: 0.0.40
codegen_flags: <defaults>
</compile_context>

<pallas_src>
import functools

import jax
import jax.numpy as jnp
from jax import lax
from jax.experimental import pallas as pl
from jax.experimental.pallas import tpu as pltpu


# ---------------------------------------------------------------------------
# Kernel
# ---------------------------------------------------------------------------
def ffn_kernel(x_ref, w1_ref, w2_ref, o_ref, acc_ref):
    # x_ref:  (tm, d_model)      w1_ref: (tk, d_model)   [PyTorch fc1.weight tile]
    # w2_ref: (d_model, tk)      o_ref:  (tm, d_model)   acc_ref: (tm, d_model) f32
    k = pl.program_id(1)

    # h = relu(x @ w1_tile^T): contract d_model (last dim of both operands).
    h = lax.dot_general(
        x_ref[...], w1_ref[...],
        dimension_numbers=(((1,), (1,)), ((), ())),
        preferred_element_type=jnp.float32,
    )
    # Cast back to the (possibly bf16) operand dtype before the second MXU dot;
    # accumulation stays f32 in acc_ref.
    h = jnp.maximum(h, 0.0).astype(x_ref.dtype)

    # update = h @ w2_tile^T: contract the d_ff tile (last dim of both operands).
    update = lax.dot_general(
        h, w2_ref[...],
        dimension_numbers=(((1,), (1,)), ((), ())),
        preferred_element_type=jnp.float32,
    )

    # Skip zero-init + first accumulate: write on k==0, accumulate afterwards.
    @pl.when(k == 0)
    def _():
        acc_ref[...] = update

    @pl.when(k > 0)
    def _():
        acc_ref[...] += update

    @pl.when(k == pl.num_programs(1) - 1)
    def _():
        o_ref[...] = acc_ref[...].astype(o_ref.dtype)


# ---------------------------------------------------------------------------
# Tile / budget selection helpers
# ---------------------------------------------------------------------------
def _round_up(x, m):
    return ((x + m - 1) // m) * m


def _tpu_generation():
    """Best-effort TPU generation detection (5 / 6 / 7), None if unknown."""
    try:
        kind = jax.devices()[0].device_kind.lower()
    except Exception:
        return None
    if "7x" in kind or "v7" in kind:
        return 7
    if "v6" in kind:
        return 6
    if "v5" in kind:
        return 5
    return None


def _vmem_capacity_bytes(gen):
    try:
        cap = int(pltpu.get_tpu_info().vmem_capacity_bytes)
        if cap > 0:
            return cap
    except Exception:
        pass
    # Fallbacks: v7x has 64 MiB per TC, v5e/v6e have 128 MiB.
    return (64 << 20) if gen == 7 else (128 << 20)


def _sublane_mult(dtype):
    """tm rounding so x/out tiles stay fully packed per vreg."""
    itemsize = jnp.dtype(dtype).itemsize
    if itemsize >= 4:
        return 8
    if itemsize == 2:
        return 16
    return 32


# Per-generation tm targets (arithmetic intensity ~ tm flops per weight byte
# must beat ~240 (v5e), ~656 (v6e), ~311 per-TC (v7x)).
_TM_TARGET = {5: 384, 6: 1024, 7: 512}


def _pick_tm(M, target, mult):
    if M <= target:
        return _round_up(M, mult)
    return max(mult, (target // mult) * mult)


def _pick_tk(d_ff, target=512):
    # tk is the lane dim of the w2 tile: must be a multiple of 128 or the full d_ff.
    if d_ff % 128 != 0 or d_ff <= 128:
        return d_ff
    tk = min((target // 128) * 128, d_ff)
    while tk > 128 and d_ff % tk != 0:
        tk -= 128
    return tk if (tk >= 128 and d_ff % tk == 0) else d_ff


def _shrink_tk(tk, d_ff):
    """Next smaller tk that is a multiple of 128 and divides d_ff; tk if none."""
    if tk <= 128 or tk % 128 != 0:
        return tk
    new = tk - 128
    while new >= 128 and d_ff % new != 0:
        new -= 128
    return new if new >= 128 else tk


def _vmem_demand(tm, tk, d_model, x_item, w_item):
    # Double-buffered x / w1 / w2 / out tiles + resident f32 accumulator + slack.
    return (2 * (tm * d_model * x_item            # x tile
                 + tk * d_model * w_item          # w1 tile
                 + d_model * tk * w_item          # w2 tile
                 + tm * d_model * x_item)         # out tile
            + tm * d_model * 4                    # f32 accumulator
            + (2 << 20))                          # Mosaic internal scratch slack


# ---------------------------------------------------------------------------
# Wrapper
# ---------------------------------------------------------------------------
@functools.partial(jax.jit, static_argnames=("tm", "tk"))
def position_wise_feed_forward(x, w1, w2, *, tm=None, tk=None):
    """x: [batch, seq, d_model]; w1: [d_ff, d_model]; w2: [d_model, d_ff]
    (PyTorch nn.Linear weight convention). Returns [batch, seq, d_model]."""
    batch, seq, d_model = x.shape
    d_ff = w1.shape[0]
    M = batch * seq

    gen = _tpu_generation()
    vmem_cap = _vmem_capacity_bytes(gen)
    # Leave headroom for Mosaic internal scratch (~56 MiB usable of v7x's 64 MiB).
    budget = min(vmem_cap - (8 << 20), (vmem_cap * 7) // 8)

    mult = _sublane_mult(x.dtype)
    x_item = jnp.dtype(x.dtype).itemsize
    w_item = jnp.dtype(w1.dtype).itemsize

    auto_tiles = tm is None and tk is None
    if tm is None:
        tm = _pick_tm(M, _TM_TARGET.get(gen, 512), mult)
    if tk is None:
        tk = _pick_tk(d_ff)

    if auto_tiles:
        # v7x megacore: if the whole M fits in a single tile, split it so both
        # TensorCores get an M tile under the "parallel" grid axis.
        if gen == 7:
            m_pad_min = _round_up(M, mult)
            if tm >= m_pad_min and m_pad_min >= 2 * mult:
                tm = _round_up((m_pad_min + 1) // 2, mult)

        # Fit the double-buffered working set into the physical VMEM budget:
        # shrink tk first (keeps arithmetic intensity ~ tm), then halve tm.
        for _ in range(64):
            if _vmem_demand(tm, tk, d_model, x_item, w_item) <= budget:
                break
            new_tk = _shrink_tk(tk, d_ff)
            if new_tk < tk:
                tk = new_tk
                continue
            if tm > mult:
                tm = max(mult, _round_up(max(tm // 2, mult), mult))
                continue
            break

    M_pad = _round_up(M, tm)
    x2d = x.reshape(M, d_model)
    if M_pad != M:
        x2d = jnp.pad(x2d, ((0, M_pad - M), (0, 0)))

    n_m = M_pad // tm
    n_k = max(1, d_ff // tk)

    demand = _vmem_demand(tm, tk, d_model, x_item, w_item)
    if demand <= budget:
        vmem_limit = int(min(max(demand, 32 << 20), max(budget, demand)))
    else:
        vmem_limit = int(demand)  # explicit tiles too big; let Mosaic report it

    cost = pl.CostEstimate(
        flops=4 * M_pad * d_model * d_ff,               # two matmuls
        transcendentals=0,
        bytes_accessed=(M_pad * d_model * x_item        # x read once per M tile
                        + n_m * 2 * d_ff * d_model * w_item  # weights per M tile
                        + M_pad * d_model * x_item),    # output
    )

    out2d = pl.pallas_call(
        ffn_kernel,
        out_shape=jax.ShapeDtypeStruct((M_pad, d_model), x.dtype),
        grid_spec=pltpu.PrefetchScalarGridSpec(
            num_scalar_prefetch=0,
            grid=(n_m, n_k),  # reduction (d_ff) axis last
            in_specs=[
                pl.BlockSpec((tm, d_model), lambda i, k: (i, 0)),   # x
                pl.BlockSpec((tk, d_model), lambda i, k: (k, 0)),   # w1 (d_ff, d_model)
                pl.BlockSpec((d_model, tk), lambda i, k: (0, k)),   # w2 (d_model, d_ff)
            ],
            out_specs=pl.BlockSpec((tm, d_model), lambda i, k: (i, 0)),
            scratch_shapes=[pltpu.VMEM((tm, d_model), jnp.float32)],
        ),
        compiler_params=pltpu.CompilerParams(
            dimension_semantics=("parallel", "arbitrary"),
            vmem_limit_bytes=vmem_limit,
        ),
        cost_estimate=cost,
    )(x2d, w1, w2)

    return out2d[:M].reshape(batch, seq, d_model)


def _reference(x, w1, w2):
    return jnp.maximum(x @ w1.T, 0.0) @ w2.T


if __name__ == "__main__":
    key = jax.random.PRNGKey(0)

    # --- Test 1: small shapes from the module spec (single-tile path) ---
    batch, seq, d_model, d_ff = 2, 8, 32, 64
    kx, k1, k2, key = jax.random.split(key, 4)
    x = jax.random.normal(kx, (batch, seq, d_model), dtype=jnp.float32)
    b1 = 1.0 / (d_model ** 0.5)
    b2 = 1.0 / (d_ff ** 0.5)
    w1 = jax.random.uniform(k1, (d_ff, d_model), jnp.float32, -b1, b1)  # fc1.weight
    w2 = jax.random.uniform(k2, (d_model, d_ff), jnp.float32, -b2, b2)  # fc2.weight

    out = jax.block_until_ready(position_wise_feed_forward(x, w1, w2))
    ref = _reference(x, w1, w2)
    assert out.shape == (batch, seq, d_model)
    assert jnp.allclose(out, ref, atol=1e-5, rtol=1e-5)

    # --- Test 2: exercise M padding, multiple M tiles and the d_ff reduction grid ---
    batch2, seq2, d_model2, d_ff2 = 2, 40, 128, 256   # M=80 -> padded to 96 with tm=32
    kx, k1, k2, key = jax.random.split(key, 4)
    x2 = jax.random.normal(kx, (batch2, seq2, d_model2), dtype=jnp.float32)
    w1_2 = jax.random.uniform(k1, (d_ff2, d_model2), jnp.float32,
                              -1.0 / d_model2 ** 0.5, 1.0 / d_model2 ** 0.5)
    w2_2 = jax.random.uniform(k2, (d_model2, d_ff2), jnp.float32,
                              -1.0 / d_ff2 ** 0.5, 1.0 / d_ff2 ** 0.5)

    out2 = jax.block_until_ready(
        position_wise_feed_forward(x2, w1_2, w2_2, tm=32, tk=128))
    ref2 = _reference(x2, w1_2, w2_2)
    assert out2.shape == (batch2, seq2, d_model2)
    assert jnp.allclose(out2, ref2, atol=1e-4, rtol=1e-4)

    # --- Test 3: bf16 path (dtype-aware tm rounding + narrow-dtype MXU dots) ---
    kx, k1, k2, key = jax.random.split(key, 4)
    x3 = jax.random.normal(kx, (2, 8, 128), dtype=jnp.bfloat16)
    w1_3 = jax.random.uniform(k1, (256, 128), jnp.float32, -1.0 / 128 ** 0.5,
                              1.0 / 128 ** 0.5).astype(jnp.bfloat16)
    w2_3 = jax.random.uniform(k2, (128, 256), jnp.float32, -1.0 / 256 ** 0.5,
                              1.0 / 256 ** 0.5).astype(jnp.bfloat16)
    out3 = jax.block_until_ready(position_wise_feed_forward(x3, w1_3, w2_3))
    ref3 = _reference(x3.astype(jnp.float32), w1_3.astype(jnp.float32),
                      w2_3.astype(jnp.float32))
    assert out3.shape == (2, 8, 128)
    assert jnp.allclose(out3.astype(jnp.float32), ref3, atol=1e-1, rtol=1e-1)

    print("KERNEL_OK")
</pallas_src>

<mosaic_0001>
module attributes {stable_mosaic.version = 11 : i64} {
  func.func @ffn_kernel(%arg0: i32, %arg1: i32, %arg2: memref<16x32xf32, #tpu.memory_space<vmem>>, %arg3: memref<64x32xf32, #tpu.memory_space<vmem>>, %arg4: memref<32x64xf32, #tpu.memory_space<vmem>>, %arg5: memref<16x32xf32, #tpu.memory_space<vmem>>, %arg6: memref<16x32xf32, #tpu.memory_space<vmem>>) attributes {dimension_semantics = [#tpu.dimension_semantics<parallel>, #tpu.dimension_semantics<arbitrary>], iteration_bounds = array<i64: 1, 1>, scalar_prefetch = 0 : i64, scratch_operands = 1 : i64, tpu.core_type = #tpu.core_type<tc>, window_params = [{transform_indices = @transform_0, window_bounds = array<i64: 16, 32>}, {transform_indices = @transform_1, window_bounds = array<i64: 64, 32>}, {transform_indices = @transform_2, window_bounds = array<i64: 32, 64>}, {transform_indices = @transform_3, window_bounds = array<i64: 16, 32>}]} {
    %c0 = arith.constant 0 : index
    %c0_0 = arith.constant 0 : index
    %0 = vector.load %arg2[%c0, %c0_0] : memref<16x32xf32, #tpu.memory_space<vmem>>, vector<16x32xf32>
    %c0_1 = arith.constant 0 : index
    %c0_2 = arith.constant 0 : index
    %1 = vector.load %arg3[%c0_1, %c0_2] : memref<64x32xf32, #tpu.memory_space<vmem>>, vector<64x32xf32>
    %cst = arith.constant dense<0.000000e+00> : vector<16x64xf32>
    %2 = tpu.matmul %0, %1, %cst {dimension_numbers = #tpu.dot_dimension_numbers<[1], [1], [0], [0], [0, 0, 1, 0], [], []>} : vector<16x32xf32>, vector<64x32xf32>, vector<16x64xf32> -> vector<16x64xf32>
    %cst_3 = arith.constant 0.000000e+00 : f32
    %3 = vector.broadcast %cst_3 : f32 to vector<16x64xf32>
    %4 = arith.maximumf %2, %3 : vector<16x64xf32>
    %c0_4 = arith.constant 0 : index
    %c0_5 = arith.constant 0 : index
    %5 = vector.load %arg4[%c0_4, %c0_5] : memref<32x64xf32, #tpu.memory_space<vmem>>, vector<32x64xf32>
    %cst_6 = arith.constant dense<0.000000e+00> : vector<16x32xf32>
    %6 = tpu.matmul %4, %5, %cst_6 {dimension_numbers = #tpu.dot_dimension_numbers<[1], [1], [0], [0], [0, 0, 1, 0], [], []>} : vector<16x64xf32>, vector<32x64xf32>, vector<16x32xf32> -> vector<16x32xf32>
    %c0_i32 = arith.constant 0 : i32
    %7 = arith.cmpi eq, %arg1, %c0_i32 : i32
    %8 = arith.extui %7 : i1 to i32
    %c0_i32_7 = arith.constant 0 : i32
    %9 = arith.cmpi ne, %8, %c0_i32_7 : i32
    scf.if %9 {
      %c0_12 = arith.constant 0 : index
      %c0_13 = arith.constant 0 : index
      %16 = vector.load %arg6[%c0_12, %c0_13] : memref<16x32xf32, #tpu.memory_space<vmem>>, vector<16x32xf32>
      tpu.vector_store %arg6[%c0_12, %c0_13], %6 {strides = array<i32>} : memref<16x32xf32, #tpu.memory_space<vmem>>, vector<16x32xf32>,
    } else {
    }
    %c0_i32_8 = arith.constant 0 : i32
    %10 = arith.cmpi sgt, %arg1, %c0_i32_8 : i32
    %11 = arith.extui %10 : i1 to i32
    %c0_i32_9 = arith.constant 0 : i32
    %12 = arith.cmpi ne, %11, %c0_i32_9 : i32
    scf.if %12 {
      %c0_12 = arith.constant 0 : index
      %c0_13 = arith.constant 0 : index
      %16 = vector.load %arg6[%c0_12, %c0_13] : memref<16x32xf32, #tpu.memory_space<vmem>>, vector<16x32xf32>
      %17 = arith.addf %16, %6 : vector<16x32xf32>
      %c0_14 = arith.constant 0 : index
      %c0_15 = arith.constant 0 : index
      %18 = vector.load %arg6[%c0_14, %c0_15] : memref<16x32xf32, #tpu.memory_space<vmem>>, vector<16x32xf32>
      tpu.vector_store %arg6[%c0_14, %c0_15], %17 {strides = array<i32>} : memref<16x32xf32, #tpu.memory_space<vmem>>, vector<16x32xf32>,
    } else {
    }
    %c0_i32_10 = arith.constant 0 : i32
    %13 = arith.cmpi eq, %arg1, %c0_i32_10 : i32
    %14 = arith.extui %13 : i1 to i32
    %c0_i32_11 = arith.constant 0 : i32
    %15 = arith.cmpi ne, %14, %c0_i32_11 : i32
    scf.if %15 {
      %c0_12 = arith.constant 0 : index
      %c0_13 = arith.constant 0 : index
      %16 = vector.load %arg6[%c0_12, %c0_13] : memref<16x32xf32, #tpu.memory_space<vmem>>, vector<16x32xf32>
      %c0_14 = arith.constant 0 : index
      %c0_15 = arith.constant 0 : index
      %17 = vector.load %arg5[%c0_14, %c0_15] : memref<16x32xf32, #tpu.memory_space<vmem>>, vector<16x32xf32>
      tpu.vector_store %arg5[%c0_14, %c0_15], %16 {strides = array<i32>} : memref<16x32xf32, #tpu.memory_space<vmem>>, vector<16x32xf32>,
    } else {
    }
    return
  }
  func.func @transform_0(%arg0: i32, %arg1: i32) -> (i32, i32) {
    %c0_i32 = arith.constant 0 : i32
    %c0_i32_0 = arith.constant 0 : i32
    return %arg0, %c0_i32 : i32, i32
  }
  func.func @transform_1(%arg0: i32, %arg1: i32) -> (i32, i32) {
    %c0_i32 = arith.constant 0 : i32
    %c0_i32_0 = arith.constant 0 : i32
    return %arg1, %c0_i32 : i32, i32
  }
  func.func @transform_2(%arg0: i32, %arg1: i32) -> (i32, i32) {
    %c0_i32 = arith.constant 0 : i32
    %c0_i32_0 = arith.constant 0 : i32
    return %c0_i32, %arg1 : i32, i32
  }
  func.func @transform_3(%arg0: i32, %arg1: i32) -> (i32, i32) {
    %c0_i32 = arith.constant 0 : i32
    %c0_i32_0 = arith.constant 0 : i32
    return %arg0, %c0_i32 : i32, i32
  }
}

</mosaic_0001>

<llo_original>
// kernel: position_wise_feed_forward.1
$region0: #{position_wise_feed_forward.1}
  #allocation0 [shape = 'u32[]', space=smem, size = 0x4, offset = 0x4, fixed_abs, tag = 'smem constant byte address 0x4 - core index']
  #allocation1 [shape = 'u32[144,128]{1,0:T(1,128)}', space=vmem, size = 0x12000, scoped, tag = 'internal scratch']
  #allocation2 [shape = 'f32[16,32]{1,0:T(8,128)}', space=vmem, size = 0x2000, scoped, tag = 'scratch operand']
  %s0 = inlined_call_operand.vmem [shape: f32[16,32], index: 0, kind: input, shape index: {}]
  %s1 = inlined_call_operand.vmem [shape: f32[64,32], index: 1, kind: input, shape index: {}]
  %s2 = inlined_call_operand.vmem [shape: f32[32,64], index: 2, kind: input, shape index: {}]
  %s3 = inlined_call_operand.hbm [shape: f32[16,32], index: 3, kind: output, shape index: {}]
  %s4 = sld [smem:[#allocation0]]
  $region34: #{position_wise_feed_forward.1} parent=0
    _
  %s6 = ssub.s32 1, %s4
  %s7 = scalar_select 0, %s6, %s4
  $region1: #{position_wise_feed_forward.1} parent=0
    #allocation3 [shape = 'u8[8192]{0}', space=vmem, size = 0x2000, scoped, tag = 'output window, operand 0, single buffered']
    #allocation4 [shape = 's32[1]{0}', space=sflag, size = 0x4, scoped, tag = 'scoped memory for position_wise_feed_forward.1']
    %8 = vsyncpa [#allocation4], 0
    // Predicated region
    $region2: #{position_wise_feed_forward.1} parent=1 // pred_check
      _
    $region3: #{position_wise_feed_forward.1} parent=1 // pred_check_branch
      %10 = sbr.rel (0) target = $region5
    $region4: #{position_wise_feed_forward.1} parent=1 // pred_region
      _
    $region5: #{position_wise_feed_forward.1} parent=1 // pred_fallthru
      _
    // Predicated region
    $region6: #{position_wise_feed_forward.1} parent=1 // pred_check
      _
    $region7: #{position_wise_feed_forward.1} parent=1 // pred_check_branch
      %12 = sbr.rel (0) target = $region9
    $region8: #{position_wise_feed_forward.1} parent=1 // pred_region
      _
    $region9: #{position_wise_feed_forward.1} parent=1 // pred_fallthru
      _
    // Predicated region
    $region10: #{position_wise_feed_forward.1} parent=1 // pred_check
      _
    $region11: #{position_wise_feed_forward.1} parent=1 // pred_check_branch
      %14 = sbr.rel (0) target = $region13
    $region12: #{position_wise_feed_forward.1} parent=1 // pred_region
      _
    $region13: #{position_wise_feed_forward.1} parent=1 // pred_fallthru
      _
    %v15 = vld [vmem:[%s0] sm:$0xff]
    %v16 = vld [vmem:[%s0 + $0x8] sm:$0xff]
    %v17 = vld [vmem:[%s1] sm:$0xff]
    %v18 = vld [vmem:[%s1 + $0x8] sm:$0xff]
    %v19 = vld [vmem:[%s1 + $0x10] sm:$0xff]
    %v20 = vld [vmem:[%s1 + $0x18] sm:$0xff]
    %v21 = vld [vmem:[%s1 + $0x20] sm:$0xff]
    %v22 = vld [vmem:[%s1 + $0x28] sm:$0xff]
    %v23 = vld [vmem:[%s1 + $0x30] sm:$0xff]
    %v24 = vld [vmem:[%s1 + $0x38] sm:$0xff]
    %vm25 = vcmask 261120
    %v27 = vsel %vm25, %v15, 0
    %v30 = vsel %vm25, %v16, 0
    %v33 = vsel %vm25, %v17, 0
    %v36 = vsel %vm25, %v18, 0
    %v39 = vsel %vm25, %v19, 0
    %v42 = vsel %vm25, %v20, 0
    %v45 = vsel %vm25, %v21, 0
    %v48 = vsel %vm25, %v22, 0
    %v51 = vsel %vm25, %v23, 0
    %v54 = vsel %vm25, %v24, 0
    %56 = vmatprep.subr.mxu0 0.0
    %57 = vmatpush1.xpose.msra.mxu0 0.0
    %58 = vmatprep.subr.mxu0 0.0
    %59 = vmatpush1.xpose.msra.mxu0 0.0
    %60 = vmatprep.subr.mxu0 0.0
    %61 = vmatpush1.xpose.msra.mxu0 0.0
    %62 = vmatprep.subr.mxu0 0.0
    %63 = vmatpush1.xpose.msra.mxu0 0.0
    %64 = vmatprep.subr.mxu0 0.0
    %65 = vmatpush1.xpose.msra.mxu0 0.0
    %66 = vmatprep.subr.mxu0 0.0
    %67 = vmatpush1.xpose.msra.mxu0 0.0
    %68 = vmatprep.subr.mxu0 0.0
    %69 = vmatpush1.xpose.msra.mxu0 0.0
    %70 = vmatprep.subr.mxu0 0.0
    %71 = vmatpush1.xpose.msra.mxu0 0.0
    %72 = vmatprep.subr.mxu0 0.0
    %73 = vmatpush1.xpose.msra.mxu0 %v54
    %74 = vmatprep.subr.mxu0 0.0
    %75 = vmatpush1.xpose.msra.mxu0 %v51
    %76 = vmatprep.subr.mxu0 0.0
    %77 = vmatpush1.xpose.msra.mxu0 %v48
    %78 = vmatprep.subr.mxu0 0.0
    %79 = vmatpush1.xpose.msra.mxu0 %v45
    %80 = vmatprep.subr.mxu0 0.0
    %81 = vmatpush1.xpose.msra.mxu0 %v42
    %82 = vmatprep.subr.mxu0 0.0
    %83 = vmatpush1.xpose.msra.mxu0 %v39
    %84 = vmatprep.subr.mxu0 0.0
    %85 = vmatpush1.xpose.msra.mxu0 %v36
    %86 = vmatprep.subr.mxu0 0.0
    %87 = vmatpush1.xpose.msra.mxu0 %v33
    %88 = vmatprep.subr.mxu0 0.0
    %89 = vmatpush2.xpose.msra.mxu0 0.0
    %90 = vmatprep.subr.mxu0 0.0
    %91 = vmatpush2.xpose.msra.mxu0 0.0
    %92 = vmatprep.subr.mxu0 0.0
    %93 = vmatpush2.xpose.msra.mxu0 0.0
    %94 = vmatprep.subr.mxu0 0.0
    %95 = vmatpush2.xpose.msra.mxu0 0.0
    %96 = vmatprep.subr.mxu0 0.0
    %97 = vmatpush2.xpose.msra.mxu0 0.0
    %98 = vmatprep.subr.mxu0 0.0
    %99 = vmatpush2.xpose.msra.mxu0 0.0
    %100 = vmatprep.subr.mxu0 0.0
    %101 = vmatpush2.xpose.msra.mxu0 0.0
    %102 = vmatprep.subr.mxu0 0.0
    %103 = vmatpush2.xpose.msra.mxu0 0.0
    %104 = vmatprep.subr.mxu0 0.0
    %105 = vmatpush2.xpose.msra.mxu0 0.0
    %106 = vmatprep.subr.mxu0 0.0
    %107 = vmatpush2.xpose.msra.mxu0 0.0
    %108 = vmatprep.subr.mxu0 0.0
    %109 = vmatpush2.xpose.msra.mxu0 0.0
    %110 = vmatprep.subr.mxu0 0.0
    %111 = vmatpush2.xpose.msra.mxu0 0.0
    %112 = vmatprep.subr.mxu0 0.0
    %113 = vmatpush2.xpose.msra.mxu0 0.0
    %114 = vmatprep.subr.mxu0 0.0
    %115 = vmatpush2.xpose.msra.mxu0 0.0
    %116 = vmatprep.subr.mxu0 0.0
    %117 = vmatpush2.xpose.msra.mxu0 0.0
    %118 = vmatprep.subr.mxu0 0.0
    %119 = vmatpush2.xpose.msra.mxu0 0.0
    %120 = vmatprep.mubr.f32.mxu0 0.0
    %121 = vmatmul.mubr.f32.gmra.mxu0 %v27
    %v122 = vpop.f32.mrf.mxu0
    %v123 = vadd.f32 0.0, %v122
    %v124 = vpop.f32.mrf.mxu0
    %125 = vmatprep.mubr.f32.mxu0 0.0
    %126 = vmatmul.mubr.f32.gmra.mxu0 %v30
    %v127 = vpop.f32.mrf.mxu0
    %v128 = vadd.f32 0.0, %v127
    %v129 = vpop.f32.mrf.mxu0
    %130 = vdwg.mxu0
    %v131 = vmax.f32 %v123, 0.0
    %v132 = vmax.f32 %v128, 0.0
    %v133 = vld [vmem:[%s2] sm:$0xff]
    %v134 = vld [vmem:[%s2 + $0x8] sm:$0xff]
    %v135 = vld [vmem:[%s2 + $0x10] sm:$0xff]
    %v136 = vld [vmem:[%s2 + $0x18] sm:$0xff]
    %vm137 = vcmask 523264
    %v139 = vsel %vm137, %v131, 0
    %v142 = vsel %vm137, %v132, 0
    %v145 = vsel %vm137, %v133, 0
    %v148 = vsel %vm137, %v134, 0
    %v151 = vsel %vm137, %v135, 0
    %v154 = vsel %vm137, %v136, 0
    %156 = vmatprep.subr.mxu0 0.0
    %157 = vmatpush1.xpose.msra.mxu0 0.0
    %158 = vmatprep.subr.mxu0 0.0
    %159 = vmatpush1.xpose.msra.mxu0 0.0
    %160 = vmatprep.subr.mxu0 0.0
    %161 = vmatpush1.xpose.msra.mxu0 0.0
    %162 = vmatprep.subr.mxu0 0.0
    %163 = vmatpush1.xpose.msra.mxu0 0.0
    %164 = vmatprep.subr.mxu0 0.0
    %165 = vmatpush1.xpose.msra.mxu0 0.0
    %166 = vmatprep.subr.mxu0 0.0
    %167 = vmatpush1.xpose.msra.mxu0 0.0
    %168 = vmatprep.subr.mxu0 0.0
    %169 = vmatpush1.xpose.msra.mxu0 0.0
    %170 = vmatprep.subr.mxu0 0.0
    %171 = vmatpush1.xpose.msra.mxu0 0.0
    %172 = vmatprep.subr.mxu0 0.0
    %173 = vmatpush1.xpose.msra.mxu0 0.0
    %174 = vmatprep.subr.mxu0 0.0
    %175 = vmatpush1.xpose.msra.mxu0 0.0
    %176 = vmatprep.subr.mxu0 0.0
    %177 = vmatpush1.xpose.msra.mxu0 0.0
    %178 = vmatprep.subr.mxu0 0.0
    %179 = vmatpush1.xpose.msra.mxu0 0.0
    %180 = vmatprep.subr.mxu0 0.0
    %181 = vmatpush1.xpose.msra.mxu0 %v154
    %182 = vmatprep.subr.mxu0 0.0
    %183 = vmatpush1.xpose.msra.mxu0 %v151
    %184 = vmatprep.subr.mxu0 0.0
    %185 = vmatpush1.xpose.msra.mxu0 %v148
    %186 = vmatprep.subr.mxu0 0.0
    %187 = vmatpush1.xpose.msra.mxu0 %v145
    %188 = vmatprep.subr.mxu0 0.0
    %189 = vmatpush2.xpose.msra.mxu0 0.0
    %190 = vmatprep.subr.mxu0 0.0
    %191 = vmatpush2.xpose.msra.mxu0 0.0
    %192 = vmatprep.subr.mxu0 0.0
    %193 = vmatpush2.xpose.msra.mxu0 0.0
    %194 = vmatprep.subr.mxu0 0.0
    %195 = vmatpush2.xpose.msra.mxu0 0.0
    %196 = vmatprep.subr.mxu0 0.0
    %197 = vmatpush2.xpose.msra.mxu0 0.0
    %198 = vmatprep.subr.mxu0 0.0
    %199 = vmatpush2.xpose.msra.mxu0 0.0
    %200 = vmatprep.subr.mxu0 0.0
    %201 = vmatpush2.xpose.msra.mxu0 0.0
    %202 = vmatprep.subr.mxu0 0.0
    %203 = vmatpush2.xpose.msra.mxu0 0.0
    %204 = vmatprep.subr.mxu0 0.0
    %205 = vmatpush2.xpose.msra.mxu0 0.0
    %206 = vmatprep.subr.mxu0 0.0
    %207 = vmatpush2.xpose.msra.mxu0 0.0
    %208 = vmatprep.subr.mxu0 0.0
    %209 = vmatpush2.xpose.msra.mxu0 0.0
    %210 = vmatprep.subr.mxu0 0.0
    %211 = vmatpush2.xpose.msra.mxu0 0.0
    %212 = vmatprep.subr.mxu0 0.0
    %213 = vmatpush2.xpose.msra.mxu0 0.0
    %214 = vmatprep.subr.mxu0 0.0
    %215 = vmatpush2.xpose.msra.mxu0 0.0
    %216 = vmatprep.subr.mxu0 0.0
    %217 = vmatpush2.xpose.msra.mxu0 0.0
    %218 = vmatprep.subr.mxu0 0.0
    %219 = vmatpush2.xpose.msra.mxu0 0.0
    %220 = vmatprep.mubr.f32.mxu0 0.0
    %221 = vmatmul.mubr.f32.gmra.mxu0 %v139
    %v222 = vpop.f32.mrf.mxu0
    %v223 = vadd.f32 0.0, %v222
    %v224 = vpop.f32.mrf.mxu0
    %225 = vmatprep.mubr.f32.mxu0 0.0
    %226 = vmatmul.mubr.f32.gmra.mxu0 %v142
    %v227 = vpop.f32.mrf.mxu0
    %v228 = vadd.f32 0.0, %v227
    %v229 = vpop.f32.mrf.mxu0
    %230 = vdwg.mxu0
    %p231 = scmp.eq.s32.totalorder 0, 0
    // Predicated region
    $region14: #{position_wise_feed_forward.1} parent=1 // pred_check
      %p232 = pneg %p231
    $region15: #{position_wise_feed_forward.1} parent=1 // pred_check_branch
      %234 = sbr.rel (%p232) target = $region17
    $region16: #{position_wise_feed_forward.1} parent=1 // pred_region
      %235 = vst.msk [vmem:[#allocation2] sm:$0xff] %vm25, %v223
      %236 = vst.msk [vmem:[#allocation2 + $0x8] sm:$0xff] %vm25, %v228
    $region17: #{position_wise_feed_forward.1} parent=1 // pred_fallthru
      _
    %p237 = scmp.gt.s32.totalorder 0, 0
    // Predicated region
    $region18: #{position_wise_feed_forward.1} parent=1 // pred_check
      %p238 = pneg %p237
    $region19: #{position_wise_feed_forward.1} parent=1 // pred_check_branch
      %240 = sbr.rel (%p238) target = $region21
    $region20: #{position_wise_feed_forward.1} parent=1 // pred_region
      %v241 = vld [vmem:[#allocation2] sm:$0xff]
      %v242 = vld [vmem:[#allocation2 + $0x8] sm:$0xff]
      %v243 = vadd.f32 %v241, %v223
      %v244 = vadd.f32 %v242, %v228
      %245 = vst.msk [vmem:[#allocation2] sm:$0xff] %vm25, %v243
      %246 = vst.msk [vmem:[#allocation2 + $0x8] sm:$0xff] %vm25, %v244
    $region21: #{position_wise_feed_forward.1} parent=1 // pred_fallthru
      _
    // Predicated region
    $region22: #{position_wise_feed_forward.1} parent=1 // pred_check
      %p247 = pneg %p231
    $region23: #{position_wise_feed_forward.1} parent=1 // pred_check_branch
      %249 = sbr.rel (%p247) target = $region25
    $region24: #{position_wise_feed_forward.1} parent=1 // pred_region
      %v250 = vld [vmem:[#allocation2] sm:$0xff]
      %v251 = vld [vmem:[#allocation2 + $0x8] sm:$0xff]
      %252 = vst.msk [vmem:[#allocation3] sm:$0xff] %vm25, %v250
      %253 = vst.msk [vmem:[#allocation3 + $0x8] sm:$0xff] %vm25, %v251
    $region25: #{position_wise_feed_forward.1} parent=1 // pred_fallthru
      _
    // Predicated region
    $region26: #{position_wise_feed_forward.1} parent=1 // pred_check
      _
    $region27: #{position_wise_feed_forward.1} parent=1 // pred_check_branch
      %255 = sbr.rel (0) target = $region29
    $region28: #{position_wise_feed_forward.1} parent=1 // pred_region
      %s257 = ssub.s32 256, 256
      %258 = vsyncadd [#allocation4], %s257
      %s259 = sshll.u32 [#allocation3], 4
      %s260 = int_to_ptr.vmem [resolvable:$true] %s259
      %265 = dma.vmem_to_hbm [thread:$0]  %s260, 256, %s3, [#allocation4], 128, 128, 8
    $region29: #{position_wise_feed_forward.1} parent=1 // pred_fallthru
      _
    // Predicated region
    $region30: #{position_wise_feed_forward.1} parent=1 // pred_check
      _
    $region31: #{position_wise_feed_forward.1} parent=1 // pred_check_branch
      %267 = sbr.rel (0) target = $region33
    $region32: #{position_wise_feed_forward.1} parent=1 // pred_region
      %268 = dma.done [#allocation4], 256
    $region33: #{position_wise_feed_forward.1} parent=1 // pred_fallthru
      _
    %269 = vsyncpa [#allocation4], 1

</llo_original>
